<compile_context>
chip_gen: v6e
topology: v6e:2x2x1
jax: 0.10.0
libtpu: 0.0.40
codegen_flags: <defaults>
</compile_context>

<pallas_src>
import functools

import jax
import jax.numpy as jnp
from jax.experimental import pallas as pl
from jax.experimental.pallas import tpu as pltpu

_LANES = 128
_MAX_TILE_ROWS = 1024  # (1024,128) f32 tile = 512 KiB per tensor per buffer


def _round_up(x, m):
    return ((x + m - 1) // m) * m


def _row_sums_8(x2d):
    """(rows,128) f32 -> (8,128) partial sum using pure VPU vreg adds."""
    rows, lanes = x2d.shape
    return jnp.sum(x2d.reshape(rows // 8, 8, lanes), axis=0)


def _partial_sums_kernel(real_ref, fake_ref, psum_real_ref, psum_fake_ref):
    # Phase 1: per-tile lane-wise partial sums (zero padding contributes 0).
    r = real_ref[...].astype(jnp.float32)
    f = fake_ref[...].astype(jnp.float32)
    psum_real_ref[...] = _row_sums_8(r)
    psum_fake_ref[...] = _row_sums_8(f)


def _penalty_kernel(ema_ref, real_ref, fake_ref, psq_real_ref, psq_fake_ref,
                    *, n_real, n_fake, tile_rows, padded_elems):
    # Phase 2: per-tile lane-wise partial sums of relu(.)^2 with updated EMAs.
    t = pl.program_id(0)
    r = real_ref[...].astype(jnp.float32)
    f = fake_ref[...].astype(jnp.float32)
    ema_real = ema_ref[0]
    ema_fake = ema_ref[1]

    sq_real = jnp.square(jnp.maximum(r - ema_fake, 0.0))
    sq_fake = jnp.square(jnp.maximum(ema_real - f, 0.0))

    # Mask padded tail elements (only generated if padding actually exists).
    if n_real < padded_elems or n_fake < padded_elems:
        rows, lanes = r.shape
        row_ids = jax.lax.broadcasted_iota(jnp.int32, (rows, lanes), 0)
        lane_ids = jax.lax.broadcasted_iota(jnp.int32, (rows, lanes), 1)
        flat_idx = (t * tile_rows + row_ids) * lanes + lane_ids
        if n_real < padded_elems:
            sq_real = jnp.where(flat_idx < n_real, sq_real, 0.0)
        if n_fake < padded_elems:
            sq_fake = jnp.where(flat_idx < n_fake, sq_fake, 0.0)

    psq_real_ref[...] = _row_sums_8(sq_real)
    psq_fake_ref[...] = _row_sums_8(sq_fake)


def _pad_to_slab(x, padded_rows):
    """Flatten (native dtype, no f32 upcast), zero-pad, reshape lane-dense."""
    flat = x.reshape(-1)
    total = padded_rows * _LANES
    if total > flat.size:
        flat = jnp.pad(flat, (0, total - flat.size))
    return flat.reshape(padded_rows, _LANES)


@jax.jit
def lecam_forward(logits_real, logits_fake, ema_real, ema_fake, decay):
    n_real = int(logits_real.size)
    n_fake = int(logits_fake.size)

    # Shared lane-dense layout for both tensors (masking handles any padding).
    rows_needed = max(_round_up(max(n_real, n_fake), _LANES) // _LANES, 1)
    tile_rows = min(_MAX_TILE_ROWS, _round_up(rows_needed, 16))
    num_tiles = _round_up(rows_needed, tile_rows) // tile_rows
    padded_rows = num_tiles * tile_rows

    real2d = _pad_to_slab(logits_real, padded_rows)
    fake2d = _pad_to_slab(logits_fake, padded_rows)

    compiler_params = pltpu.CompilerParams(
        dimension_semantics=("parallel",),      # shards tiles across v7x's 2 TCs
        vmem_limit_bytes=32 * 1024 * 1024,      # explicit; safe on v5e/v6e/v7x
    )

    block_in = pl.BlockSpec((tile_rows, _LANES), lambda t: (t, 0))
    block_out = pl.BlockSpec((8, _LANES), lambda t: (t, 0))
    smem_spec = pl.BlockSpec(memory_space=pltpu.MemorySpace.SMEM)
    partial_shape = jax.ShapeDtypeStruct((num_tiles * 8, _LANES), jnp.float32)

    # ---- call 1: partial sums -> means -> EMA update --------------------
    psum_real, psum_fake = pl.pallas_call(
        _partial_sums_kernel,
        out_shape=(partial_shape, partial_shape),
        grid=(num_tiles,),
        in_specs=[block_in, block_in],
        out_specs=(block_out, block_out),
        compiler_params=compiler_params,
    )(real2d, fake2d)

    decay = jnp.asarray(decay, jnp.float32)
    mean_real = jnp.sum(psum_real) / jnp.float32(n_real)
    mean_fake = jnp.sum(psum_fake) / jnp.float32(n_fake)
    new_ema_real = decay * jnp.asarray(ema_real, jnp.float32) + (1.0 - decay) * mean_real
    new_ema_fake = decay * jnp.asarray(ema_fake, jnp.float32) + (1.0 - decay) * mean_fake
    emas = jnp.stack([new_ema_real, new_ema_fake])  # single packed SMEM (2,) operand

    # ---- call 2: partial relu^2 sums with the updated EMAs --------------
    penalty_kernel = functools.partial(
        _penalty_kernel,
        n_real=n_real, n_fake=n_fake,
        tile_rows=tile_rows, padded_elems=padded_rows * _LANES)
    psq_real, psq_fake = pl.pallas_call(
        penalty_kernel,
        out_shape=(partial_shape, partial_shape),
        grid=(num_tiles,),
        in_specs=[smem_spec, block_in, block_in],
        out_specs=(block_out, block_out),
        compiler_params=compiler_params,
    )(emas, real2d, fake2d)

    loss = (jnp.sum(psq_real) / jnp.float32(n_real)
            + jnp.sum(psq_fake) / jnp.float32(n_fake))
    return loss, new_ema_real, new_ema_fake


def _reference(logits_real, logits_fake, ema_real, ema_fake, decay):
    lr = logits_real.astype(jnp.float32)
    lf = logits_fake.astype(jnp.float32)
    ema_real = decay * ema_real + (1.0 - decay) * jnp.mean(lr)
    ema_fake = decay * ema_fake + (1.0 - decay) * jnp.mean(lf)
    loss = (jnp.mean(jax.nn.relu(lr - ema_fake) ** 2)
            + jnp.mean(jax.nn.relu(ema_real - lf) ** 2))
    return loss, ema_real, ema_fake


if __name__ == "__main__":
    # Deterministic "config": lecam_ema_init = 0.0, lecam_decay = 0.999
    lecam_ema_init = 0.0
    lecam_decay = 0.999

    key = jax.random.PRNGKey(0)
    k1, k2 = jax.random.split(key)
    # Discriminator logit maps, NCHW.
    logits_real = jax.random.normal(k1, (2, 4, 16, 16), dtype=jnp.float32) + 0.5
    logits_fake = jax.random.normal(k2, (2, 4, 16, 16), dtype=jnp.float32) - 0.5

    ema_real0 = jnp.float32(lecam_ema_init)
    ema_fake0 = jnp.float32(lecam_ema_init)

    loss, ema_r, ema_f = lecam_forward(
        logits_real, logits_fake, ema_real0, ema_fake0, jnp.float32(lecam_decay))
    jax.block_until_ready((loss, ema_r, ema_f))

    ref_loss, ref_r, ref_f = _reference(
        logits_real, logits_fake, ema_real0, ema_fake0, jnp.float32(lecam_decay))

    assert jnp.allclose(loss, ref_loss, rtol=1e-5, atol=1e-6), (loss, ref_loss)
    assert jnp.allclose(ema_r, ref_r, rtol=1e-5, atol=1e-6), (ema_r, ref_r)
    assert jnp.allclose(ema_f, ref_f, rtol=1e-5, atol=1e-6), (ema_f, ref_f)

    print("KERNEL_OK")
</pallas_src>

<mosaic_0001>
module attributes {stable_mosaic.version = 11 : i64} {
  func.func @_partial_sums_kernel(%arg0: i32, %arg1: memref<16x128xf32, #tpu.memory_space<vmem>>, %arg2: memref<16x128xf32, #tpu.memory_space<vmem>>, %arg3: memref<8x128xf32, #tpu.memory_space<vmem>>, %arg4: memref<8x128xf32, #tpu.memory_space<vmem>>) attributes {dimension_semantics = [#tpu.dimension_semantics<parallel>], iteration_bounds = array<i64: 1>, scalar_prefetch = 0 : i64, scratch_operands = 0 : i64, tpu.core_type = #tpu.core_type<tc>, window_params = [{transform_indices = @transform_0, window_bounds = array<i64: 16, 128>}, {transform_indices = @transform_1, window_bounds = array<i64: 16, 128>}, {transform_indices = @transform_2, window_bounds = array<i64: 8, 128>}, {transform_indices = @transform_3, window_bounds = array<i64: 8, 128>}]} {
    %c0 = arith.constant 0 : index
    %c0_0 = arith.constant 0 : index
    %0 = vector.load %arg1[%c0, %c0_0] : memref<16x128xf32, #tpu.memory_space<vmem>>, vector<16x128xf32>
    %c0_1 = arith.constant 0 : index
    %c0_2 = arith.constant 0 : index
    %1 = vector.load %arg2[%c0_1, %c0_2] : memref<16x128xf32, #tpu.memory_space<vmem>>, vector<16x128xf32>
    %2 = vector.shape_cast %0 : vector<16x128xf32> to vector<2x8x128xf32>
    %cst = arith.constant dense<0.000000e+00> : vector<8x128xf32>
    %3 = vector.multi_reduction <add>, %2, %cst [0] : vector<2x8x128xf32> to vector<8x128xf32>
    %c0_3 = arith.constant 0 : index
    %c0_4 = arith.constant 0 : index
    %4 = vector.load %arg3[%c0_3, %c0_4] : memref<8x128xf32, #tpu.memory_space<vmem>>, vector<8x128xf32>
    tpu.vector_store %arg3[%c0_3, %c0_4], %3 {strides = array<i32>} : memref<8x128xf32, #tpu.memory_space<vmem>>, vector<8x128xf32>,
    %5 = vector.shape_cast %1 : vector<16x128xf32> to vector<2x8x128xf32>
    %cst_5 = arith.constant dense<0.000000e+00> : vector<8x128xf32>
    %6 = vector.multi_reduction <add>, %5, %cst_5 [0] : vector<2x8x128xf32> to vector<8x128xf32>
    %c0_6 = arith.constant 0 : index
    %c0_7 = arith.constant 0 : index
    %7 = vector.load %arg4[%c0_6, %c0_7] : memref<8x128xf32, #tpu.memory_space<vmem>>, vector<8x128xf32>
    tpu.vector_store %arg4[%c0_6, %c0_7], %6 {strides = array<i32>} : memref<8x128xf32, #tpu.memory_space<vmem>>, vector<8x128xf32>,
    return
  }
  func.func @transform_0(%arg0: i32) -> (i32, i32) {
    %c0_i32 = arith.constant 0 : i32
    %c0_i32_0 = arith.constant 0 : i32
    return %arg0, %c0_i32 : i32, i32
  }
  func.func @transform_1(%arg0: i32) -> (i32, i32) {
    %c0_i32 = arith.constant 0 : i32
    %c0_i32_0 = arith.constant 0 : i32
    return %arg0, %c0_i32 : i32, i32
  }
  func.func @transform_2(%arg0: i32) -> (i32, i32) {
    %c0_i32 = arith.constant 0 : i32
    %c0_i32_0 = arith.constant 0 : i32
    return %arg0, %c0_i32 : i32, i32
  }
  func.func @transform_3(%arg0: i32) -> (i32, i32) {
    %c0_i32 = arith.constant 0 : i32
    %c0_i32_0 = arith.constant 0 : i32
    return %arg0, %c0_i32 : i32, i32
  }
}

module attributes {stable_mosaic.version = 11 : i64} {
  func.func @_penalty_kernel(%arg0: i32, %arg1: memref<2xf32, #tpu.memory_space<smem>>, %arg2: memref<16x128xf32, #tpu.memory_space<vmem>>, %arg3: memref<16x128xf32, #tpu.memory_space<vmem>>, %arg4: memref<8x128xf32, #tpu.memory_space<vmem>>, %arg5: memref<8x128xf32, #tpu.memory_space<vmem>>) attributes {dimension_semantics = [#tpu.dimension_semantics<parallel>], iteration_bounds = array<i64: 1>, scalar_prefetch = 0 : i64, scratch_operands = 0 : i64, tpu.core_type = #tpu.core_type<tc>, window_params = [{transform_indices = @transform_0, window_bounds = array<i64: 2>}, {transform_indices = @transform_1, window_bounds = array<i64: 16, 128>}, {transform_indices = @transform_2, window_bounds = array<i64: 16, 128>}, {transform_indices = @transform_3, window_bounds = array<i64: 8, 128>}, {transform_indices = @transform_4, window_bounds = array<i64: 8, 128>}]} {
    %c0 = arith.constant 0 : index
    %c0_0 = arith.constant 0 : index
    %0 = vector.load %arg2[%c0, %c0_0] : memref<16x128xf32, #tpu.memory_space<vmem>>, vector<16x128xf32>
    %c0_1 = arith.constant 0 : index
    %c0_2 = arith.constant 0 : index
    %1 = vector.load %arg3[%c0_1, %c0_2] : memref<16x128xf32, #tpu.memory_space<vmem>>, vector<16x128xf32>
    %c0_3 = arith.constant 0 : index
    %2 = memref.load %arg1[%c0_3] : memref<2xf32, #tpu.memory_space<smem>>
    %c1 = arith.constant 1 : index
    %3 = memref.load %arg1[%c1] : memref<2xf32, #tpu.memory_space<smem>>
    %4 = vector.broadcast %3 : f32 to vector<16x128xf32>
    %5 = arith.subf %0, %4 : vector<16x128xf32>
    %cst = arith.constant 0.000000e+00 : f32
    %6 = vector.broadcast %cst : f32 to vector<16x128xf32>
    %7 = arith.maximumf %5, %6 : vector<16x128xf32>
    %8 = arith.mulf %7, %7 : vector<16x128xf32>
    %9 = vector.broadcast %2 : f32 to vector<16x128xf32>
    %10 = arith.subf %9, %1 : vector<16x128xf32>
    %cst_4 = arith.constant 0.000000e+00 : f32
    %11 = vector.broadcast %cst_4 : f32 to vector<16x128xf32>
    %12 = arith.maximumf %10, %11 : vector<16x128xf32>
    %13 = arith.mulf %12, %12 : vector<16x128xf32>
    %14 = vector.shape_cast %8 : vector<16x128xf32> to vector<2x8x128xf32>
    %cst_5 = arith.constant dense<0.000000e+00> : vector<8x128xf32>
    %15 = vector.multi_reduction <add>, %14, %cst_5 [0] : vector<2x8x128xf32> to vector<8x128xf32>
    %c0_6 = arith.constant 0 : index
    %c0_7 = arith.constant 0 : index
    %16 = vector.load %arg4[%c0_6, %c0_7] : memref<8x128xf32, #tpu.memory_space<vmem>>, vector<8x128xf32>
    tpu.vector_store %arg4[%c0_6, %c0_7], %15 {strides = array<i32>} : memref<8x128xf32, #tpu.memory_space<vmem>>, vector<8x128xf32>,
    %17 = vector.shape_cast %13 : vector<16x128xf32> to vector<2x8x128xf32>
    %cst_8 = arith.constant dense<0.000000e+00> : vector<8x128xf32>
    %18 = vector.multi_reduction <add>, %17, %cst_8 [0] : vector<2x8x128xf32> to vector<8x128xf32>
    %c0_9 = arith.constant 0 : index
    %c0_10 = arith.constant 0 : index
    %19 = vector.load %arg5[%c0_9, %c0_10] : memref<8x128xf32, #tpu.memory_space<vmem>>, vector<8x128xf32>
    tpu.vector_store %arg5[%c0_9, %c0_10], %18 {strides = array<i32>} : memref<8x128xf32, #tpu.memory_space<vmem>>, vector<8x128xf32>,
    return
  }
  func.func @transform_0(%arg0: i32) -> i32 {
    %c0_i32 = arith.constant 0 : i32
    %c0_i32_0 = arith.constant 0 : i32
    return %c0_i32 : i32
  }
  func.func @transform_1(%arg0: i32) -> (i32, i32) {
    %c0_i32 = arith.constant 0 : i32
    %c0_i32_0 = arith.constant 0 : i32
    return %arg0, %c0_i32 : i32, i32
  }
  func.func @transform_2(%arg0: i32) -> (i32, i32) {
    %c0_i32 = arith.constant 0 : i32
    %c0_i32_0 = arith.constant 0 : i32
    return %arg0, %c0_i32 : i32, i32
  }
  func.func @transform_3(%arg0: i32) -> (i32, i32) {
    %c0_i32 = arith.constant 0 : i32
    %c0_i32_0 = arith.constant 0 : i32
    return %arg0, %c0_i32 : i32, i32
  }
  func.func @transform_4(%arg0: i32) -> (i32, i32) {
    %c0_i32 = arith.constant 0 : i32
    %c0_i32_0 = arith.constant 0 : i32
    return %arg0, %c0_i32 : i32, i32
  }
}

</mosaic_0001>

<llo_original>
// kernel: lecam_forward.2
$region0: #{lecam_forward.2}
  #allocation0 [shape = 'u32[]', space=smem, size = 0x4, offset = 0x4, fixed_abs, tag = 'smem constant byte address 0x4 - core index']
  #allocation1 [shape = 'u32[144,128]{1,0:T(1,128)}', space=vmem, size = 0x12000, scoped, tag = 'internal scratch']
  %s0 = inlined_call_operand.vmem [shape: f32[16,128], index: 0, kind: input, shape index: {}]
  %s1 = inlined_call_operand.vmem [shape: f32[16,128], index: 1, kind: input, shape index: {}]
  %s2 = inlined_call_operand.vmem [shape: f32[8,128], index: 2, kind: output, shape index: {0}]
  %s3 = inlined_call_operand.vmem [shape: f32[8,128], index: 3, kind: output, shape index: {1}]
  %4 = xla_tuple %s2, %s3
  %s5 = sld [smem:[#allocation0]]
  $region26: #{lecam_forward.2} parent=0
    _
  %s7 = ssub.s32 1, %s5
  %s8 = scalar_select 0, %s7, %s5
  // Predicated region
  $region2: #{lecam_forward.2} parent=0 // pred_check
    _
  $region3: #{lecam_forward.2} parent=0 // pred_check_branch
    %10 = sbr.rel (0) target = $region5
  $region4: #{lecam_forward.2} parent=0 // pred_region
    _
  $region5: #{lecam_forward.2} parent=0 // pred_fallthru
    _
  // Predicated region
  $region6: #{lecam_forward.2} parent=0 // pred_check
    _
  $region7: #{lecam_forward.2} parent=0 // pred_check_branch
    %12 = sbr.rel (0) target = $region9
  $region8: #{lecam_forward.2} parent=0 // pred_region
    _
  $region9: #{lecam_forward.2} parent=0 // pred_fallthru
    _
  %v13 = vld [vmem:[%s0] sm:$0xff]
  %v14 = vld [vmem:[%s0 + $0x8] sm:$0xff]
  %v15 = vld [vmem:[%s1] sm:$0xff]
  %v16 = vld [vmem:[%s1 + $0x8] sm:$0xff]
  %v17 = vadd.f32 %v13, %v14
  %18 = vst [vmem:[%s2] sm:$0xff] %v17
  %v19 = vadd.f32 %v15, %v16
  %20 = vst [vmem:[%s3] sm:$0xff] %v19
  // Predicated region
  $region10: #{lecam_forward.2} parent=0 // pred_check
    _
  $region11: #{lecam_forward.2} parent=0 // pred_check_branch
    %22 = sbr.rel (0) target = $region13
  $region12: #{lecam_forward.2} parent=0 // pred_region
    _
  $region13: #{lecam_forward.2} parent=0 // pred_fallthru
    _
  // Predicated region
  $region14: #{lecam_forward.2} parent=0 // pred_check
    _
  $region15: #{lecam_forward.2} parent=0 // pred_check_branch
    %24 = sbr.rel (0) target = $region17
  $region16: #{lecam_forward.2} parent=0 // pred_region
    _
  $region17: #{lecam_forward.2} parent=0 // pred_fallthru
    _
  // Predicated region
  $region18: #{lecam_forward.2} parent=0 // pred_check
    _
  $region19: #{lecam_forward.2} parent=0 // pred_check_branch
    %26 = sbr.rel (0) target = $region21
  $region20: #{lecam_forward.2} parent=0 // pred_region
    _
  $region21: #{lecam_forward.2} parent=0 // pred_fallthru
    _
  // Predicated region
  $region22: #{lecam_forward.2} parent=0 // pred_check
    _
  $region23: #{lecam_forward.2} parent=0 // pred_check_branch
    %28 = sbr.rel (0) target = $region25
  $region24: #{lecam_forward.2} parent=0 // pred_region
    _
  $region25: #{lecam_forward.2} parent=0 // pred_fallthru
    _

// kernel: lecam_forward.3
$region0: #{lecam_forward.3}
  #allocation0 [shape = 'u32[]', space=smem, size = 0x4, offset = 0x4, fixed_abs, tag = 'smem constant byte address 0x4 - core index']
  #allocation1 [shape = 'u32[144,128]{1,0:T(1,128)}', space=vmem, size = 0x12000, scoped, tag = 'internal scratch']
  %s0 = inlined_call_operand.vmem [shape: f32[2], index: 0, kind: input, shape index: {}]
  %s1 = inlined_call_operand.vmem [shape: f32[16,128], index: 1, kind: input, shape index: {}]
  %s2 = inlined_call_operand.vmem [shape: f32[16,128], index: 2, kind: input, shape index: {}]
  %s3 = inlined_call_operand.vmem [shape: f32[8,128], index: 3, kind: output, shape index: {0}]
  %s4 = inlined_call_operand.vmem [shape: f32[8,128], index: 4, kind: output, shape index: {1}]
  %5 = xla_tuple %s3, %s4
  %s6 = sld [smem:[#allocation0]]
  $region34: #{lecam_forward.3} parent=0
    _
  %s8 = ssub.s32 1, %s6
  %s9 = scalar_select 0, %s8, %s6
  $region1: #{lecam_forward.3} parent=0
    #allocation2 [shape = 'u8[512]{0}', space=smem, size = 0x200, scoped, tag = 'input window, operand 0, single buffered']
    #allocation3 [shape = 's32[1]{0}', space=sflag, size = 0x4, scoped, tag = 'scoped memory for lecam_forward.3']
    %10 = vsyncpa [#allocation3], 0
    // Predicated region
    $region2: #{lecam_forward.3} parent=1 // pred_check
      _
    $region3: #{lecam_forward.3} parent=1 // pred_check_branch
      %12 = sbr.rel (0) target = $region5
    $region4: #{lecam_forward.3} parent=1 // pred_region
      %s14 = ssub.s32 16, 16
      %15 = vsyncadd [#allocation3], %s14
      %s17 = sshll.u32 %s0, 4
      %s18 = int_to_ptr.vmem [resolvable:$true] %s17
      %20 = dma.vmem_to_smem %s18, 16, [#allocation2], [#allocation3]
    $region5: #{lecam_forward.3} parent=1 // pred_fallthru
      _
    // Predicated region
    $region6: #{lecam_forward.3} parent=1 // pred_check
      _
    $region7: #{lecam_forward.3} parent=1 // pred_check_branch
      %22 = sbr.rel (0) target = $region9
    $region8: #{lecam_forward.3} parent=1 // pred_region
      _
    $region9: #{lecam_forward.3} parent=1 // pred_fallthru
      _
    // Predicated region
    $region10: #{lecam_forward.3} parent=1 // pred_check
      _
    $region11: #{lecam_forward.3} parent=1 // pred_check_branch
      %24 = sbr.rel (0) target = $region13
    $region12: #{lecam_forward.3} parent=1 // pred_region
      _
    $region13: #{lecam_forward.3} parent=1 // pred_fallthru
      _
    // Predicated region
    $region14: #{lecam_forward.3} parent=1 // pred_check
      _
    $region15: #{lecam_forward.3} parent=1 // pred_check_branch
      %26 = sbr.rel (0) target = $region17
    $region16: #{lecam_forward.3} parent=1 // pred_region
      %27 = dma.done [#allocation3], 16
    $region17: #{lecam_forward.3} parent=1 // pred_fallthru
      _
    %28 = sfence
    %v29 = vld [vmem:[%s1] sm:$0xff]
    %v30 = vld [vmem:[%s1 + $0x8] sm:$0xff]
    %v31 = vld [vmem:[%s2] sm:$0xff]
    %v32 = vld [vmem:[%s2 + $0x8] sm:$0xff]
    %s33 = sld [smem:[#allocation2]]
    %s34 = sld [smem:[#allocation2 + $0x1]]
    %v35 = vstv %s34
    %v36 = vsub.f32 %v29, %v35
    %v37 = vsub.f32 %v30, %v35
    %v38 = vmax.f32 %v36, 0.0
    %v39 = vmax.f32 %v37, 0.0
    %v40 = vmul.f32 %v38, %v38
    %v41 = vmul.f32 %v39, %v39
    %v42 = vstv %s33
    %v43 = vsub.f32 %v42, %v31
    %v44 = vsub.f32 %v42, %v32
    %v45 = vmax.f32 %v43, 0.0
    %v46 = vmax.f32 %v44, 0.0
    %v47 = vmul.f32 %v45, %v45
    %v48 = vmul.f32 %v46, %v46
    %v49 = vadd.f32 %v40, %v41
    %50 = vst [vmem:[%s3] sm:$0xff] %v49
    %v51 = vadd.f32 %v47, %v48
    %52 = vst [vmem:[%s4] sm:$0xff] %v51
    // Predicated region
    $region18: #{lecam_forward.3} parent=1 // pred_check
      _
    $region19: #{lecam_forward.3} parent=1 // pred_check_branch
      %54 = sbr.rel (0) target = $region21
    $region20: #{lecam_forward.3} parent=1 // pred_region
      _
    $region21: #{lecam_forward.3} parent=1 // pred_fallthru
      _
    // Predicated region
    $region22: #{lecam_forward.3} parent=1 // pred_check
      _
    $region23: #{lecam_forward.3} parent=1 // pred_check_branch
      %56 = sbr.rel (0) target = $region25
    $region24: #{lecam_forward.3} parent=1 // pred_region
      _
    $region25: #{lecam_forward.3} parent=1 // pred_fallthru
      _
    // Predicated region
    $region26: #{lecam_forward.3} parent=1 // pred_check
      _
    $region27: #{lecam_forward.3} parent=1 // pred_check_branch
      %58 = sbr.rel (0) target = $region29
    $region28: #{lecam_forward.3} parent=1 // pred_region
      _
    $region29: #{lecam_forward.3} parent=1 // pred_fallthru
      _
    // Predicated region
    $region30: #{lecam_forward.3} parent=1 // pred_check
      _
    $region31: #{lecam_forward.3} parent=1 // pred_check_branch
      %60 = sbr.rel (0) target = $region33
    $region32: #{lecam_forward.3} parent=1 // pred_region
      _
    $region33: #{lecam_forward.3} parent=1 // pred_fallthru
      _
    %61 = vsyncpa [#allocation3], 1

</llo_original>
